<compile_context>
chip_gen: v5e
topology: v5e:2x2
jax: 0.10.0
libtpu: 0.0.40
codegen_flags: <defaults>
</compile_context>

<pallas_src>
import jax
import jax.numpy as jnp
from jax import lax
from jax.experimental import pallas as pl
from jax.experimental.pallas import tpu as pltpu


def _round_up(n: int, m: int) -> int:
    return ((n + m - 1) // m) * m


def _make_kernel(single_class: bool, apply_sigmoid: bool):
    def kernel(x_ref, w1_ref, b1_ref, w2_ref, b2_ref, out_ref):
        # x_ref: (TILE_B, D_in) f32, natural layout. Cast to bf16 in-kernel (VPU work
        # hidden under the next tile's DMA).
        x = x_ref[...].astype(w1_ref.dtype)

        # Layer 1 as a transposed-RHS MXU matmul (contract last dims of both operands,
        # same pattern as q @ k.T): h^T = W1 @ x^T -> (H, TILE_B). Batch stays on the
        # lane axis, so downstream ops and the final store are lane-dense.
        h = lax.dot_general(
            w1_ref[...], x, (((1,), (1,)), ((), ())),
            preferred_element_type=jnp.float32)
        h = jnp.maximum(h + b1_ref[...], 0.0)          # bias bcast over lanes + ReLU (VPU)

        if single_class:
            # C == 1: a (1,H)x(H,TILE_B) matmul wastes the systolic array; a VPU
            # multiply + sublane (XLU) reduce sits in different VLIW slots from the
            # MXU and keeps h in f32 (no extra bf16 rounding pass).
            z = jnp.sum(w2_ref[...] * h, axis=0, keepdims=True) + b2_ref[...]
        else:
            z = jnp.dot(w2_ref[...], h.astype(w2_ref.dtype),
                        preferred_element_type=jnp.float32) + b2_ref[...]

        if apply_sigmoid:
            # exp -> EUP; approx reciprocal -> EUP vrcp (keeps the VALU slot clear).
            z = pl.reciprocal(1.0 + jnp.exp(-z), approx=True)

        out_ref[...] = z.astype(out_ref.dtype)

    return kernel


def prepare_params(w1, b1, w2, b2, *, compute_dtype=jnp.bfloat16):
    """Cast/reshape nn.Linear params ONCE (hoisted out of the per-call path).

    w1: (H, D_in), b1: (H,), w2: (C, H), b2: (C,)  -- PyTorch (out, in) layout.
    """
    H, _ = w1.shape
    C = w2.shape[0]
    w1c = w1.astype(compute_dtype)
    b1c = b1.reshape(H, 1).astype(jnp.float32)
    if C == 1:
        w2c = w2.reshape(H, 1).astype(jnp.float32)   # f32 column for the VPU layer-2 path
    else:
        w2c = w2.astype(compute_dtype)
    b2c = b2.reshape(C, 1).astype(jnp.float32)
    return w1c, b1c, w2c, b2c


def ann_forward(x, params, *, task="classification", tile_b=2048):
    """ANN.forward: sigmoid(relu(x @ W1^T + b1) @ W2^T + b2); sigmoid iff classification.

    x: (B, D_in) f32 in its natural layout (no host-side transpose/pad/cast).
    params: output of prepare_params().
    Returns (B, C) f32.
    """
    w1c, b1c, w2c, b2c = params
    B, D_in = x.shape
    H = w1c.shape[0]
    C = b2c.shape[0]
    single_class = (C == 1)
    apply_sigmoid = (task == "classification")

    # Tile choice: big lane-dense tiles amortize the ~0.35us/step fixed overhead.
    # Keep a multiple of 512 (friendly to the 128-wide v5e and 256-wide v6e/v7x MXU
    # / lane axis) and keep >= 2 tiles when B > 512 so the single "parallel" grid
    # axis can be sharded across v7x's 2 TensorCores.
    if B <= 512:
        tile = _round_up(B, 8)            # single tile; sublane-aligned
    else:
        tile = min(tile_b, _round_up(pl.cdiv(B, 2), 512))
    n_tiles = pl.cdiv(B, tile)
    b_pad = n_tiles * tile                # only the OUTPUT is padded (no input copy)

    kernel = _make_kernel(single_class, apply_sigmoid)

    w_bytes = sum(int(a.size * a.dtype.itemsize) for a in (w1c, b1c, w2c, b2c))
    cost = pl.CostEstimate(
        flops=2 * B * D_in * H + 2 * B * H * C,
        transcendentals=B * C if apply_sigmoid else 0,
        bytes_accessed=B * D_in * x.dtype.itemsize + w_bytes + B * C * 4,
    )

    outT = pl.pallas_call(
        kernel,
        out_shape=jax.ShapeDtypeStruct((C, b_pad), jnp.float32),
        grid=(n_tiles,),
        in_specs=[
            pl.BlockSpec((tile, D_in), lambda i: (i, 0)),     # x: natural layout, tiled over batch
            pl.BlockSpec((H, D_in), lambda i: (0, 0)),        # W1 bf16, VMEM-resident
            pl.BlockSpec((H, 1), lambda i: (0, 0)),           # b1 f32
            pl.BlockSpec(w2c.shape, lambda i: (0, 0)),        # W2 ((H,1) f32 or (C,H) bf16)
            pl.BlockSpec((C, 1), lambda i: (0, 0)),           # b2 f32
        ],
        out_specs=pl.BlockSpec((C, tile), lambda i: (0, i)),  # lane-dense: batch on lanes
        compiler_params=pltpu.CompilerParams(
            dimension_semantics=("parallel",),                # batch tiles independent
            vmem_limit_bytes=32 * 1024 * 1024,
        ),
        cost_estimate=cost,
    )(x, w1c, b1c, w2c, b2c)

    # OOB rows of a partial edge tile only produce garbage in output columns that are
    # never stored / are sliced off here (no cross-column mixing in this layout).
    return outT[:, :B].T


def init_params(key, input_layer, hidden_layer, num_of_classes):
    """nn.Linear-style uniform(-1/sqrt(fan_in), +1/sqrt(fan_in)), PyTorch (out, in) layout."""
    k1, k2, k3, k4 = jax.random.split(key, 4)
    bound1 = 1.0 / jnp.sqrt(input_layer)
    bound2 = 1.0 / jnp.sqrt(hidden_layer)
    w1 = jax.random.uniform(k1, (hidden_layer, input_layer), jnp.float32,
                            minval=-bound1, maxval=bound1)
    b1 = jax.random.uniform(k2, (hidden_layer,), jnp.float32,
                            minval=-bound1, maxval=bound1)
    w2 = jax.random.uniform(k3, (num_of_classes, hidden_layer), jnp.float32,
                            minval=-bound2, maxval=bound2)
    b2 = jax.random.uniform(k4, (num_of_classes,), jnp.float32,
                            minval=-bound2, maxval=bound2)
    return w1, b1, w2, b2


if __name__ == "__main__":
    # ANN(input_layer=16, hidden_layer=32, num_of_classes=1, task='classification',
    #     weighted_model=True, train_set_size=64)
    batch = 8
    input_layer = 16
    hidden_layer = 32
    num_of_classes = 1
    train_set_size = 64

    key = jax.random.PRNGKey(0)
    kx, kp = jax.random.split(key)

    x = jax.random.normal(kx, (batch, input_layer), jnp.float32)
    w1, b1, w2, b2 = init_params(kp, input_layer, hidden_layer, num_of_classes)

    # data_weights_vector is a non-trainable buffer unused in forward(); kept for parity.
    data_weights_vector = jnp.ones((train_set_size,), jnp.float32)

    params = prepare_params(w1, b1, w2, b2)   # casts hoisted: done once, reused per call
    out = jax.block_until_ready(ann_forward(x, params))
    assert out.shape == (batch, num_of_classes)

    # Reference matching kernel numerics: bf16 layer-1 matmul (f32 accum), f32 layer 2.
    xb, w1b = x.astype(jnp.bfloat16), w1.astype(jnp.bfloat16)
    h_ref = jnp.maximum(jnp.dot(xb, w1b.T, preferred_element_type=jnp.float32) + b1, 0.0)
    z_ref = h_ref @ w2.T + b2
    ref = jax.nn.sigmoid(z_ref)
    assert jnp.allclose(out, ref, atol=2e-3, rtol=2e-3), \
        float(jnp.max(jnp.abs(out - ref)))

    # Looser sanity check against the full-f32 PyTorch-equivalent forward.
    ref_f32 = jax.nn.sigmoid(jnp.maximum(x @ w1.T + b1, 0.0) @ w2.T + b2)
    assert jnp.allclose(out, ref_f32, atol=3e-2), \
        float(jnp.max(jnp.abs(out - ref_f32)))

    print("KERNEL_OK")
</pallas_src>

<mosaic_0001>
module attributes {stable_mosaic.version = 11 : i64} {
  func.func @kernel(%arg0: i32, %arg1: memref<8x16xf32, #tpu.memory_space<vmem>>, %arg2: memref<32x16xbf16, #tpu.memory_space<vmem>>, %arg3: memref<32x1xf32, #tpu.memory_space<vmem>>, %arg4: memref<32x1xf32, #tpu.memory_space<vmem>>, %arg5: memref<1x1xf32, #tpu.memory_space<vmem>>, %arg6: memref<1x8xf32, #tpu.memory_space<vmem>>) attributes {dimension_semantics = [#tpu.dimension_semantics<parallel>], iteration_bounds = array<i64: 1>, scalar_prefetch = 0 : i64, scratch_operands = 0 : i64, tpu.core_type = #tpu.core_type<tc>, window_params = [{transform_indices = @transform_0, window_bounds = array<i64: 8, 16>}, {pipeline_mode = #tpu.pipeline_mode<synchronous>, transform_indices = @transform_1, window_bounds = array<i64: 32, 16>}, {pipeline_mode = #tpu.pipeline_mode<synchronous>, transform_indices = @transform_2, window_bounds = array<i64: 32, 1>}, {pipeline_mode = #tpu.pipeline_mode<synchronous>, transform_indices = @transform_3, window_bounds = array<i64: 32, 1>}, {pipeline_mode = #tpu.pipeline_mode<synchronous>, transform_indices = @transform_4, window_bounds = array<i64: 1, 1>}, {transform_indices = @transform_5, window_bounds = array<i64: 1, 8>}]} {
    %c0 = arith.constant 0 : index
    %c0_0 = arith.constant 0 : index
    %0 = vector.load %arg1[%c0, %c0_0] : memref<8x16xf32, #tpu.memory_space<vmem>>, vector<8x16xf32>
    %1 = arith.truncf %0 : vector<8x16xf32> to vector<8x16xbf16>
    %c0_1 = arith.constant 0 : index
    %c0_2 = arith.constant 0 : index
    %2 = vector.load %arg2[%c0_1, %c0_2] : memref<32x16xbf16, #tpu.memory_space<vmem>>, vector<32x16xbf16>
    %cst = arith.constant dense<0.000000e+00> : vector<32x8xf32>
    %3 = tpu.matmul %2, %1, %cst {dimension_numbers = #tpu.dot_dimension_numbers<[1], [1], [0], [0], [0, 0, 1, 0], [], []>} : vector<32x16xbf16>, vector<8x16xbf16>, vector<32x8xf32> -> vector<32x8xf32>
    %c0_3 = arith.constant 0 : index
    %c0_4 = arith.constant 0 : index
    %4 = vector.load %arg3[%c0_3, %c0_4] : memref<32x1xf32, #tpu.memory_space<vmem>>, vector<32x1xf32>
    %5 = vector.broadcast %4 : vector<32x1xf32> to vector<32x8xf32>
    %6 = arith.addf %3, %5 : vector<32x8xf32>
    %cst_5 = arith.constant 0.000000e+00 : f32
    %7 = vector.broadcast %cst_5 : f32 to vector<32x8xf32>
    %8 = arith.maximumf %6, %7 : vector<32x8xf32>
    %c0_6 = arith.constant 0 : index
    %c0_7 = arith.constant 0 : index
    %9 = vector.load %arg4[%c0_6, %c0_7] : memref<32x1xf32, #tpu.memory_space<vmem>>, vector<32x1xf32>
    %10 = vector.broadcast %9 : vector<32x1xf32> to vector<32x8xf32>
    %11 = arith.mulf %10, %8 : vector<32x8xf32>
    %cst_8 = arith.constant dense<0.000000e+00> : vector<8xf32>
    %12 = vector.multi_reduction <add>, %11, %cst_8 [0] : vector<32x8xf32> to vector<8xf32>
    %13 = vector.shape_cast %12 : vector<8xf32> to vector<1x8xf32>
    %c0_9 = arith.constant 0 : index
    %c0_10 = arith.constant 0 : index
    %14 = vector.load %arg5[%c0_9, %c0_10] : memref<1x1xf32, #tpu.memory_space<vmem>>, vector<1x1xf32>
    %15 = vector.broadcast %14 : vector<1x1xf32> to vector<1x8xf32>
    %16 = arith.addf %13, %15 : vector<1x8xf32>
    %cst_11 = arith.constant 0.000000e+00 : f32
    %17 = vector.broadcast %cst_11 : f32 to vector<1x8xf32>
    %18 = arith.subf %17, %16 : vector<1x8xf32>
    %19 = math.exp %18 : vector<1x8xf32>
    %cst_12 = arith.constant 1.000000e+00 : f32
    %20 = vector.broadcast %cst_12 : f32 to vector<1x8xf32>
    %21 = arith.addf %20, %19 : vector<1x8xf32>
    %22 = tpu.reciprocal %21 {approx = true} : vector<1x8xf32> -> vector<1x8xf32>
    %c0_13 = arith.constant 0 : index
    %c0_14 = arith.constant 0 : index
    %23 = vector.load %arg6[%c0_13, %c0_14] : memref<1x8xf32, #tpu.memory_space<vmem>>, vector<1x8xf32>
    tpu.vector_store %arg6[%c0_13, %c0_14], %22 {strides = array<i32>} : memref<1x8xf32, #tpu.memory_space<vmem>>, vector<1x8xf32>,
    return
  }
  func.func @transform_0(%arg0: i32) -> (i32, i32) {
    %c0_i32 = arith.constant 0 : i32
    %c0_i32_0 = arith.constant 0 : i32
    return %arg0, %c0_i32 : i32, i32
  }
  func.func @transform_1(%arg0: i32) -> (i32, i32) {
    %c0_i32 = arith.constant 0 : i32
    %c0_i32_0 = arith.constant 0 : i32
    %c0_i32_1 = arith.constant 0 : i32
    return %c0_i32, %c0_i32_0 : i32, i32
  }
  func.func @transform_2(%arg0: i32) -> (i32, i32) {
    %c0_i32 = arith.constant 0 : i32
    %c0_i32_0 = arith.constant 0 : i32
    %c0_i32_1 = arith.constant 0 : i32
    return %c0_i32, %c0_i32_0 : i32, i32
  }
  func.func @transform_3(%arg0: i32) -> (i32, i32) {
    %c0_i32 = arith.constant 0 : i32
    %c0_i32_0 = arith.constant 0 : i32
    %c0_i32_1 = arith.constant 0 : i32
    return %c0_i32, %c0_i32_0 : i32, i32
  }
  func.func @transform_4(%arg0: i32) -> (i32, i32) {
    %c0_i32 = arith.constant 0 : i32
    %c0_i32_0 = arith.constant 0 : i32
    %c0_i32_1 = arith.constant 0 : i32
    return %c0_i32, %c0_i32_0 : i32, i32
  }
  func.func @transform_5(%arg0: i32) -> (i32, i32) {
    %c0_i32 = arith.constant 0 : i32
    %c0_i32_0 = arith.constant 0 : i32
    return %c0_i32, %arg0 : i32, i32
  }
}

</mosaic_0001>

<llo_original>
// kernel: tpu_custom_call.1
$region0: #{tpu_custom_call.1}
  #allocation0 [shape = 'u32[]', space=smem, size = 0x4, offset = 0x4, fixed_abs, tag = 'smem constant byte address 0x4 - core index']
  #allocation1 [shape = 'u32[72,128]{1,0:T(1,128)}', space=vmem, size = 0x9000, scoped, tag = 'internal scratch']
  #allocation2 [shape = 'f32[1,1]{1,0:T(1,128)S(1)}', space=vmem, size = 0x200, scoped, tag = 'scoped memory for tpu_custom_call.1']
  %s0 = inlined_call_operand.vmem [shape: f32[8,16], index: 0, kind: input, shape index: {}]
  %s1 = inlined_call_operand.vmem [shape: bf16[32,16], index: 1, kind: input, shape index: {}]
  %s2 = inlined_call_operand.vmem [shape: f32[32,1], index: 2, kind: input, shape index: {}]
  %s3 = inlined_call_operand.vmem [shape: f32[32,1], index: 3, kind: input, shape index: {}]
  %s4 = inlined_call_operand.<no memory space> [shape: f32[1,1], index: 4, kind: input, shape index: {}]
  %s5 = inlined_call_operand.hbm [shape: f32[1,8], index: 5, kind: output, shape index: {}]
  %s6 = sld [smem:[#allocation0]]
  $region30: #{tpu_custom_call.1} parent=0
    _
  %s8 = ssub.s32 1, %s6
  %s9 = scalar_select 0, %s8, %s6
  %v10 = vstv %s4
  %11 = vst [vmem:[#allocation2] sm:$0x1] %v10
  $region1: #{tpu_custom_call.1} parent=0
    #allocation3 [shape = 'u8[512]{0}', space=vmem, size = 0x400, scoped, tag = 'output window, operand 0, single buffered']
    #allocation4 [shape = 's32[1]{0}', space=sflag, size = 0x4, scoped, tag = 'scoped memory for tpu_custom_call.1']
    %12 = vsyncpa [#allocation4], 0
    // Predicated region
    $region2: #{tpu_custom_call.1} parent=1 // pred_check
      _
    $region3: #{tpu_custom_call.1} parent=1 // pred_check_branch
      %14 = sbr.rel (0) target = $region5
    $region4: #{tpu_custom_call.1} parent=1 // pred_region
      _
    $region5: #{tpu_custom_call.1} parent=1 // pred_fallthru
      _
    // Predicated region
    $region6: #{tpu_custom_call.1} parent=1 // pred_check
      _
    $region7: #{tpu_custom_call.1} parent=1 // pred_check_branch
      %16 = sbr.rel (0) target = $region9
    $region8: #{tpu_custom_call.1} parent=1 // pred_region
      _
    $region9: #{tpu_custom_call.1} parent=1 // pred_fallthru
      _
    // Predicated region
    $region10: #{tpu_custom_call.1} parent=1 // pred_check
      _
    $region11: #{tpu_custom_call.1} parent=1 // pred_check_branch
      %18 = sbr.rel (0) target = $region13
    $region12: #{tpu_custom_call.1} parent=1 // pred_region
      _
    $region13: #{tpu_custom_call.1} parent=1 // pred_fallthru
      _
    // Predicated region
    $region14: #{tpu_custom_call.1} parent=1 // pred_check
      _
    $region15: #{tpu_custom_call.1} parent=1 // pred_check_branch
      %20 = sbr.rel (0) target = $region17
    $region16: #{tpu_custom_call.1} parent=1 // pred_region
      _
    $region17: #{tpu_custom_call.1} parent=1 // pred_fallthru
      _
    // Predicated region
    $region18: #{tpu_custom_call.1} parent=1 // pred_check
      _
    $region19: #{tpu_custom_call.1} parent=1 // pred_check_branch
      %22 = sbr.rel (0) target = $region21
    $region20: #{tpu_custom_call.1} parent=1 // pred_region
      _
    $region21: #{tpu_custom_call.1} parent=1 // pred_fallthru
      _
    %v24 = vld [vmem:[%s0] sm:$0xff]
    %v25 = vpack.c.bf16 %v24, %v24
    %v26 = vld [vmem:[%s1] sm:$0xf]
    %v27 = vld [vmem:[%s1 + $0x4] sm:$0xf]
    %v28 = vld [vmem:[%s1 + $0x8] sm:$0xf]
    %v29 = vld [vmem:[%s1 + $0xc] sm:$0xf]
    %v30 = vld [vmem:[%s2] sm:$0xff]
    %v31 = vld [vmem:[%s2 + $0x8] sm:$0xff]
    %v32 = vld [vmem:[%s2 + $0x10] sm:$0xff]
    %v33 = vld [vmem:[%s2 + $0x18] sm:$0xff]
    %35 = vset.pattern.permute.xlu0 0
    %36 = vperm.xlu0 %35, %v30
    %v37 = vpop.permute.xlu0 %36
    %40 = vset.pattern.permute.xlu0 0
    %41 = vperm.xlu0 %40, %v31
    %v42 = vpop.permute.xlu0 %41
    %45 = vset.pattern.permute.xlu0 0
    %46 = vperm.xlu0 %45, %v32
    %v47 = vpop.permute.xlu0 %46
    %50 = vset.pattern.permute.xlu0 0
    %51 = vperm.xlu0 %50, %v33
    %v52 = vpop.permute.xlu0 %51
    %v58 = vunpack.c.l.b16 %v26
    %v59 = vunpack.c.l.b16 %v27
    %v60 = vunpack.c.l.b16 %v28
    %v61 = vunpack.c.l.b16 %v29
    %v62 = vpack.c.b16 %v59, %v58
    %v63 = vpack.c.b16 %v61, %v60
    %vm64 = vcmask 130048
    %v66 = vsel %vm64, %v62, 0
    %v69 = vsel %vm64, %v63, 0
    %v72 = vsel %vm64, %v25, 0
    %74 = vmatpush.bf16.xpose.msra.mxu0 0
    %75 = vmatpush.bf16.xpose.msra.mxu0 0
    %76 = vmatpush.bf16.xpose.msra.mxu0 0
    %77 = vmatpush.bf16.xpose.msra.mxu0 0
    %78 = vmatpush.bf16.xpose.msra.mxu0 0
    %79 = vmatpush.bf16.xpose.msra.mxu0 0
    %80 = vmatpush.bf16.xpose.msra.mxu0 0
    %81 = vmatpush.bf16.xpose.msra.mxu0 %v72
    %82 = vmatmul.bf16.gmra.mxu0 %v66
    %v83 = vpop.f32.mrf.mxu0
    %v84 = vadd.f32 %v37, %v83
    %v85 = vpop.f32.mrf.mxu0
    %v86 = vadd.f32 %v42, %v85
    %87 = vmatmul.bf16.gmra.mxu0 %v69
    %v88 = vpop.f32.mrf.mxu0
    %v89 = vadd.f32 %v47, %v88
    %v90 = vpop.f32.mrf.mxu0
    %v91 = vadd.f32 %v52, %v90
    %92 = vdwg.mxu0
    %v93 = vmax.f32 %v84, 0.0
    %v94 = vmax.f32 %v86, 0.0
    %v95 = vmax.f32 %v89, 0.0
    %v96 = vmax.f32 %v91, 0.0
    %v97 = vld [vmem:[%s3] sm:$0xff]
    %v98 = vld [vmem:[%s3 + $0x8] sm:$0xff]
    %v99 = vld [vmem:[%s3 + $0x10] sm:$0xff]
    %v100 = vld [vmem:[%s3 + $0x18] sm:$0xff]
    %102 = vset.pattern.permute.xlu0 0
    %103 = vperm.xlu0 %102, %v97
    %v104 = vpop.permute.xlu0 %103
    %107 = vset.pattern.permute.xlu0 0
    %108 = vperm.xlu0 %107, %v98
    %v109 = vpop.permute.xlu0 %108
    %112 = vset.pattern.permute.xlu0 0
    %113 = vperm.xlu0 %112, %v99
    %v114 = vpop.permute.xlu0 %113
    %117 = vset.pattern.permute.xlu0 0
    %118 = vperm.xlu0 %117, %v100
    %v119 = vpop.permute.xlu0 %118
    %v121 = vmul.f32 %v104, %v93
    %v122 = vmul.f32 %v109, %v94
    %v123 = vmul.f32 %v114, %v95
    %v124 = vmul.f32 %v119, %v96
    %vm125 = vcmask 64512
    %v126 = vsel %vm125, %v121, 0.0
    %v127 = vsel %vm125, %v122, 0.0
    %v128 = vadd.f32 %v126, %v127
    %v129 = vsel %vm125, %v123, 0.0
    %v130 = vadd.f32 %v128, %v129
    %v131 = vsel %vm125, %v124, 0.0
    %v132 = vadd.f32 %v130, %v131
    %v133 = vrot.slane %v132, 4
    %v134 = vadd.f32 %v132, %v133
    %v135 = vrot.slane %v134, 2
    %v136 = vadd.f32 %v134, %v135
    %v137 = vrot.slane %v136, 1
    %v138 = vadd.f32 %v136, %v137
    %v139 = vld [vmem:[#allocation2] sm:$0x1]
    %141 = vset.pattern.permute.xlu0 0
    %142 = vperm.xlu0 %141, %v139
    %v143 = vpop.permute.xlu0 %142
    %v145 = vperm.slane %v143, 0
    %v146 = vadd.f32 %v138, %v145
    %v147 = vsub.f32 0.0, %v146
    %v148 = vmul.f32 %v147, 1.442695
    %v149 = vpow.pop %v148
    %v150 = vadd.f32 %v149, 1.0
    %v151 = vrcp.pop %v150
    %vm152 = vcmask 57344
    %153 = vst.msk [vmem:[#allocation3] sm:$0x1] %vm152, %v151
    // Predicated region
    $region22: #{tpu_custom_call.1} parent=1 // pred_check
      _
    $region23: #{tpu_custom_call.1} parent=1 // pred_check_branch
      %155 = sbr.rel (0) target = $region25
    $region24: #{tpu_custom_call.1} parent=1 // pred_region
      %157 = vsyncadd [#allocation4], 0
      %s159 = sshll.u32 [#allocation3], 4
      %s160 = int_to_ptr.vmem [resolvable:$true] %s159
      %s161 = sshll.u32 %s5, 4
      %s162 = int_to_ptr.hbm [resolvable:$true] %s161
      %164 = dma.vmem_to_hbm [thread:$0]  %s160, 16, %s162, [#allocation4]
    $region25: #{tpu_custom_call.1} parent=1 // pred_fallthru
      _
    // Predicated region
    $region26: #{tpu_custom_call.1} parent=1 // pred_check
      _
    $region27: #{tpu_custom_call.1} parent=1 // pred_check_branch
      %166 = sbr.rel (0) target = $region29
    $region28: #{tpu_custom_call.1} parent=1 // pred_region
      %168 = dma.done [#allocation4], 16
    $region29: #{tpu_custom_call.1} parent=1 // pred_fallthru
      _
    %169 = vsyncpa [#allocation4], 1

</llo_original>
